<compile_context>
chip_gen: v7x
topology: tpu7x:2x2x1
jax: 0.10.0
libtpu: 0.0.40
codegen_flags: <defaults>
</compile_context>

<pallas_src>
import functools

import jax
import jax.numpy as jnp
from jax.experimental import pallas as pl
from jax.experimental.pallas import tpu as pltpu

_LANES = 128
_SUBLANES = 8


def _round_up(n: int, m: int) -> int:
    return ((n + m - 1) // m) * m


@functools.lru_cache(maxsize=1)
def _block_rows_for_device() -> int:
    """Per-generation row-block size for the lane-dense (rows, 128) f32 planes.

    Per-step footprint = 2 planes x (in + out) x double-buffer x block bytes:
      v5e : 2048 rows -> 1 MiB/block ->  8 MiB total (16 MiB scoped-VMEM default)
      v6e : 4096 rows -> 2 MiB/block -> 16 MiB total (32 MiB default)
      v7x : 4096 rows -> 2 MiB/block -> 16 MiB total (32 MiB default, 64 MiB phys);
            data volume per step is 4 MiB in + 4 MiB out, enough to amortize the
            ~0.35 us fixed per-step overhead against 3.2 TB/s HBM.
    """
    try:
        kind = jax.devices()[0].device_kind.lower()
    except Exception:
        return 2048
    if "v5" in kind:                 # v5e/v5p: respect v5e's 16 MiB scoped default
        return 2048
    if "v6" in kind or "7" in kind:  # v6e, v7x
        return 4096
    return 2048


def _relu_planes_kernel(re_ref, im_ref, ore_ref, oim_ref):
    # Pure VPU elementwise max; ReLU acts identically on both planes.
    ore_ref[...] = jnp.maximum(re_ref[...], jnp.zeros((), re_ref.dtype))
    oim_ref[...] = jnp.maximum(im_ref[...], jnp.zeros((), im_ref.dtype))


@jax.jit
def complex_relu_planar(re: jax.Array, im: jax.Array):
    """ReLU applied independently to float32 real & imaginary planes (planar API).

    The Pallas kernel is the only pass over the data (no complex deinterleave /
    reinterleave traffic).  Returns (relu(re), relu(im)) with the input shapes.
    """
    assert re.shape == im.shape
    orig_shape = re.shape
    n = re.size
    re = re.astype(jnp.float32)
    im = im.astype(jnp.float32)
    if n == 0:  # zero-size input: nothing to do (avoids a zero-block grid)
        return re, im

    # Lane-dense (rows, 128) view of each plane; only a <=127-element pad is needed
    # so the flat plane reshapes cleanly (pad is ReLU-invariant and sliced off).
    padded = _round_up(n, _LANES)
    rows = padded // _LANES

    def to_slab(p):
        p = p.reshape(-1)
        if padded != n:
            p = jnp.pad(p, (0, padded - n))
        return p.reshape(rows, _LANES)

    re2d, im2d = to_slab(re), to_slab(im)

    # Per-generation block rows, clamped to the array, multiple of 8 sublanes.
    block_rows = min(_block_rows_for_device(), _round_up(rows, _SUBLANES))
    grid = (pl.cdiv(rows, block_rows),)  # ragged last block handled by Pallas
    spec = pl.BlockSpec((block_rows, _LANES), lambda i: (i, 0))

    out_re, out_im = pl.pallas_call(
        _relu_planes_kernel,
        out_shape=(
            jax.ShapeDtypeStruct((rows, _LANES), jnp.float32),
            jax.ShapeDtypeStruct((rows, _LANES), jnp.float32),
        ),
        grid_spec=pltpu.PrefetchScalarGridSpec(
            num_scalar_prefetch=0,
            grid=grid,
            in_specs=[spec, spec],
            out_specs=(spec, spec),
        ),
        compiler_params=pltpu.CompilerParams(
            dimension_semantics=("parallel",),  # independent blocks -> v7x dual-TC
        ),
        cost_estimate=pl.CostEstimate(
            flops=2 * rows * _LANES,
            transcendentals=0,
            bytes_accessed=4 * rows * _LANES * 4,  # 2 planes read + 2 planes write
        ),
        # Reuse the planes' HBM buffers for the outputs.  Safe because re2d/im2d are
        # not read again after this call; do NOT read them below this point.
        input_output_aliases={0: 0, 1: 1},
    )(re2d, im2d)

    def from_slab(p):
        p = p.reshape(-1)
        if padded != n:
            p = p[:n]
        return p.reshape(orig_shape)

    return from_slab(out_re), from_slab(out_im)


@jax.jit
def complex_relu(x: jax.Array) -> jax.Array:
    """complex64-in / complex64-out wrapper matching the PyTorch module.

    Non-complex inputs are promoted and complex128 is downcast to complex64,
    mirroring the module's `.type(torch.complex64)` (silent precision loss for
    complex128, as in the reference).

    TODO(synk): lax.bitcast_convert_type rejects complex dtypes, so a zero-copy
    complex64 -> f32-pair reinterpret is not expressible; the jnp.real/jnp.imag
    deinterleave and lax.complex recombine each cost one fused HBM pass.  Use
    complex_relu_planar() when planar data is available to skip both.
    """
    x = x.astype(jnp.complex64)
    if x.size == 0:
        return x
    out_re, out_im = complex_relu_planar(jnp.real(x), jnp.imag(x))
    # Callers that can afford it may donate `x` (jax.jit donate_argnums at the call
    # site) so the recombine fusion can reuse the input's HBM buffer.
    return jax.lax.complex(out_re, out_im).astype(jnp.complex64)


if __name__ == "__main__":
    key = jax.random.PRNGKey(0)
    k_re, k_im = jax.random.split(key)
    B, C, H, W = 2, 4, 16, 16  # NCHW-style complex input
    x_re = jax.random.normal(k_re, (B, C, H, W), dtype=jnp.float32)
    x_im = jax.random.normal(k_im, (B, C, H, W), dtype=jnp.float32)
    x = jax.lax.complex(x_re, x_im).astype(jnp.complex64)

    out = jax.block_until_ready(complex_relu(x))

    # Reference check (pure JAX, same semantics as the PyTorch module).
    ref = (jnp.maximum(x_re, 0.0) + 1j * jnp.maximum(x_im, 0.0)).astype(jnp.complex64)
    assert out.shape == (B, C, H, W)
    assert out.dtype == jnp.complex64
    assert jnp.allclose(out, ref)

    # Planar fast path (kernel-only HBM traffic) gives the same numbers.
    pre, pim = jax.block_until_ready(complex_relu_planar(x_re, x_im))
    assert jnp.allclose(pre, jnp.maximum(x_re, 0.0))
    assert jnp.allclose(pim, jnp.maximum(x_im, 0.0))

    print("KERNEL_OK")
</pallas_src>

<mosaic_0001>
module attributes {stable_mosaic.version = 11 : i64} {
  func.func @_relu_planes_kernel(%arg0: i32, %arg1: memref<16x128xf32, #tpu.memory_space<vmem>>, %arg2: memref<16x128xf32, #tpu.memory_space<vmem>>, %arg3: memref<16x128xf32, #tpu.memory_space<vmem>>, %arg4: memref<16x128xf32, #tpu.memory_space<vmem>>) attributes {dimension_semantics = [#tpu.dimension_semantics<parallel>], iteration_bounds = array<i64: 1>, scalar_prefetch = 0 : i64, scratch_operands = 0 : i64, tpu.core_type = #tpu.core_type<tc>, window_params = [{transform_indices = @transform_0, window_bounds = array<i64: 16, 128>}, {transform_indices = @transform_1, window_bounds = array<i64: 16, 128>}, {transform_indices = @transform_2, window_bounds = array<i64: 16, 128>}, {transform_indices = @transform_3, window_bounds = array<i64: 16, 128>}]} {
    %c0 = arith.constant 0 : index
    %c0_0 = arith.constant 0 : index
    %0 = vector.load %arg1[%c0, %c0_0] : memref<16x128xf32, #tpu.memory_space<vmem>>, vector<16x128xf32>
    %cst = arith.constant 0.000000e+00 : f32
    %1 = vector.broadcast %cst : f32 to vector<16x128xf32>
    %2 = arith.maximumf %0, %1 : vector<16x128xf32>
    %c0_1 = arith.constant 0 : index
    %c0_2 = arith.constant 0 : index
    %3 = vector.load %arg3[%c0_1, %c0_2] : memref<16x128xf32, #tpu.memory_space<vmem>>, vector<16x128xf32>
    tpu.vector_store %arg3[%c0_1, %c0_2], %2 {strides = array<i32>} : memref<16x128xf32, #tpu.memory_space<vmem>>, vector<16x128xf32>,
    %c0_3 = arith.constant 0 : index
    %c0_4 = arith.constant 0 : index
    %4 = vector.load %arg2[%c0_3, %c0_4] : memref<16x128xf32, #tpu.memory_space<vmem>>, vector<16x128xf32>
    %cst_5 = arith.constant 0.000000e+00 : f32
    %5 = vector.broadcast %cst_5 : f32 to vector<16x128xf32>
    %6 = arith.maximumf %4, %5 : vector<16x128xf32>
    %c0_6 = arith.constant 0 : index
    %c0_7 = arith.constant 0 : index
    %7 = vector.load %arg4[%c0_6, %c0_7] : memref<16x128xf32, #tpu.memory_space<vmem>>, vector<16x128xf32>
    tpu.vector_store %arg4[%c0_6, %c0_7], %6 {strides = array<i32>} : memref<16x128xf32, #tpu.memory_space<vmem>>, vector<16x128xf32>,
    return
  }
  func.func @transform_0(%arg0: i32) -> (i32, i32) {
    %c0_i32 = arith.constant 0 : i32
    %c0_i32_0 = arith.constant 0 : i32
    return %arg0, %c0_i32 : i32, i32
  }
  func.func @transform_1(%arg0: i32) -> (i32, i32) {
    %c0_i32 = arith.constant 0 : i32
    %c0_i32_0 = arith.constant 0 : i32
    return %arg0, %c0_i32 : i32, i32
  }
  func.func @transform_2(%arg0: i32) -> (i32, i32) {
    %c0_i32 = arith.constant 0 : i32
    %c0_i32_0 = arith.constant 0 : i32
    return %arg0, %c0_i32 : i32, i32
  }
  func.func @transform_3(%arg0: i32) -> (i32, i32) {
    %c0_i32 = arith.constant 0 : i32
    %c0_i32_0 = arith.constant 0 : i32
    return %arg0, %c0_i32 : i32, i32
  }
}

</mosaic_0001>

<llo_original>
// kernel: complex_relu_planar.1
$region0: #{complex_relu_planar.1}
  #allocation0 [shape = 'u32[]', space=smem, size = 0x4, offset = 0x4, fixed_abs, tag = 'smem constant byte address 0x4 - core index']
  #allocation1 [shape = 'u32[144,128]{1,0:T(1,128)}', space=vmem, size = 0x12000, scoped, tag = 'internal scratch']
  %s0 = inlined_call_operand.vmem [shape: f32[16,128], index: 0, kind: input, shape index: {}, may-alias: {0,2}]
  %s1 = inlined_call_operand.vmem [shape: f32[16,128], index: 1, kind: input, shape index: {}, may-alias: {1,3}]
  %s2 = inlined_call_operand.vmem [shape: f32[16,128], index: 2, kind: output, shape index: {0}, may-alias: {0,2}]
  %s3 = inlined_call_operand.vmem [shape: f32[16,128], index: 3, kind: output, shape index: {1}, may-alias: {1,3}]
  %4 = xla_tuple %s2, %s3
  %s5 = sld [smem:[#allocation0]]
  $region26: #{complex_relu_planar.1} parent=0
    _
  %s7 = ssub.s32 1, %s5
  %s8 = scalar_select 0, %s7, %s5
  // Predicated region
  $region2: #{complex_relu_planar.1} parent=0 // pred_check
    _
  $region3: #{complex_relu_planar.1} parent=0 // pred_check_branch
    %10 = sbr.rel (0) target = $region5
  $region4: #{complex_relu_planar.1} parent=0 // pred_region
    _
  $region5: #{complex_relu_planar.1} parent=0 // pred_fallthru
    _
  // Predicated region
  $region6: #{complex_relu_planar.1} parent=0 // pred_check
    _
  $region7: #{complex_relu_planar.1} parent=0 // pred_check_branch
    %12 = sbr.rel (0) target = $region9
  $region8: #{complex_relu_planar.1} parent=0 // pred_region
    _
  $region9: #{complex_relu_planar.1} parent=0 // pred_fallthru
    _
  %v13 = vld [vmem:[%s0] sm:$0xff]
  %v14 = vld [vmem:[%s0 + $0x8] sm:$0xff]
  %v15 = vmax.f32 %v13, 0.0
  %v16 = vmax.f32 %v14, 0.0
  %17 = vst [vmem:[%s2] sm:$0xff] %v15
  %18 = vst [vmem:[%s2 + $0x8] sm:$0xff] %v16
  %v19 = vld [vmem:[%s1] sm:$0xff]
  %v20 = vld [vmem:[%s1 + $0x8] sm:$0xff]
  %v21 = vmax.f32 %v19, 0.0
  %v22 = vmax.f32 %v20, 0.0
  %23 = vst [vmem:[%s3] sm:$0xff] %v21
  %24 = vst [vmem:[%s3 + $0x8] sm:$0xff] %v22
  // Predicated region
  $region10: #{complex_relu_planar.1} parent=0 // pred_check
    _
  $region11: #{complex_relu_planar.1} parent=0 // pred_check_branch
    %26 = sbr.rel (0) target = $region13
  $region12: #{complex_relu_planar.1} parent=0 // pred_region
    _
  $region13: #{complex_relu_planar.1} parent=0 // pred_fallthru
    _
  // Predicated region
  $region14: #{complex_relu_planar.1} parent=0 // pred_check
    _
  $region15: #{complex_relu_planar.1} parent=0 // pred_check_branch
    %28 = sbr.rel (0) target = $region17
  $region16: #{complex_relu_planar.1} parent=0 // pred_region
    _
  $region17: #{complex_relu_planar.1} parent=0 // pred_fallthru
    _
  // Predicated region
  $region18: #{complex_relu_planar.1} parent=0 // pred_check
    _
  $region19: #{complex_relu_planar.1} parent=0 // pred_check_branch
    %30 = sbr.rel (0) target = $region21
  $region20: #{complex_relu_planar.1} parent=0 // pred_region
    _
  $region21: #{complex_relu_planar.1} parent=0 // pred_fallthru
    _
  // Predicated region
  $region22: #{complex_relu_planar.1} parent=0 // pred_check
    _
  $region23: #{complex_relu_planar.1} parent=0 // pred_check_branch
    %32 = sbr.rel (0) target = $region25
  $region24: #{complex_relu_planar.1} parent=0 // pred_region
    _
  $region25: #{complex_relu_planar.1} parent=0 // pred_fallthru
    _

</llo_original>
